<compile_context>
chip_gen: v5e
topology: v5e:2x2
jax: 0.10.0
libtpu: 0.0.40
codegen_flags: <defaults>
</compile_context>

<pallas_src>
import jax
import jax.numpy as jnp
from jax.experimental import pallas as pl
from jax.experimental.pallas import tpu as pltpu


def degree_decoder_kernel(z_ref, w1_ref, b1_ref, w2_ref, b2_ref, o_ref):
    # z_ref: (TN, C)   w1_ref: (C, H)   b1_ref: (1, H)
    # w2_ref: (1, H)   b2_ref: (1, 1)   o_ref: (1, TN)  (lane-dense output row)
    h = jnp.dot(z_ref[...], w1_ref[...], preferred_element_type=jnp.float32)
    h = jnp.maximum(h + b1_ref[...], 0.0)          # bias + ReLU in f32
    # Second layer as (1,H) . (TN,H)^T -> (1,TN): result lands directly in the
    # lane-dense output layout (no (TN,1) column / masked narrow stores).
    row = jax.lax.dot_general(
        w2_ref[...], h,
        dimension_numbers=(((1,), (1,)), ((), ())),
        preferred_element_type=jnp.float32,
    )
    o_ref[...] = (row + b2_ref[...]).astype(o_ref.dtype)


def _round_up(x, m):
    return ((x + m - 1) // m) * m


def degree_decoder(z, w1, b1, w2, b2, *, tile_n=1024):
    """Rows of z -> Linear(C,H) -> ReLU -> Linear(H,1) -> squeeze."""
    N, C = z.shape
    H = w1.shape[1]

    # Big, 128-aligned row tile (kernel is HBM-read-bound), capped so the grid
    # keeps >= 2 steps when N allows it (keeps both v7x TensorCores busy).
    tile_n = max(128, min(tile_n, _round_up(pl.cdiv(N, 2), 128)))
    n_pad = _round_up(N, tile_n)
    if n_pad != N:
        z = jnp.pad(z, ((0, n_pad - N), (0, 0)))

    w2_row = w2.reshape(1, H)          # (H, 1) -> (1, H): kernel emits a row
    grid = (n_pad // tile_n,)

    out = pl.pallas_call(
        degree_decoder_kernel,
        out_shape=jax.ShapeDtypeStruct((1, n_pad), z.dtype),
        grid_spec=pltpu.PrefetchScalarGridSpec(
            num_scalar_prefetch=0,
            grid=grid,
            in_specs=[
                pl.BlockSpec((tile_n, C), lambda i: (i, 0)),   # z tile (streamed)
                pl.BlockSpec((C, H), lambda i: (0, 0)),        # W1 (resident)
                pl.BlockSpec((1, H), lambda i: (0, 0)),        # b1 (resident)
                pl.BlockSpec((1, H), lambda i: (0, 0)),        # W2 row (resident)
                pl.BlockSpec((1, 1), lambda i: (0, 0)),        # b2 (resident)
            ],
            out_specs=pl.BlockSpec((1, tile_n), lambda i: (0, i)),  # lane-dense
        ),
        compiler_params=pltpu.CompilerParams(
            dimension_semantics=("parallel",),
        ),
    )(z, w1, b1, w2_row, b2)

    # torch .squeeze(): (N, 1) -> (N,); drop padded rows.
    return out[0, :N]


def init_params(key, in_channels, hidden_channels, dtype=jnp.float32):
    # Deterministic init mimicking torch.nn.Linear defaults
    # (uniform in +/- 1/sqrt(fan_in)); weights stored as (in, out).
    k1, k2, k3, k4 = jax.random.split(key, 4)
    bound1 = 1.0 / (in_channels ** 0.5)
    bound2 = 1.0 / (hidden_channels ** 0.5)
    w1 = jax.random.uniform(k1, (in_channels, hidden_channels), dtype,
                            minval=-bound1, maxval=bound1)
    b1 = jax.random.uniform(k2, (1, hidden_channels), dtype,
                            minval=-bound1, maxval=bound1)
    w2 = jax.random.uniform(k3, (hidden_channels, 1), dtype,
                            minval=-bound2, maxval=bound2)
    b2 = jax.random.uniform(k4, (1, 1), dtype,
                            minval=-bound2, maxval=bound2)
    return w1, b1, w2, b2


if __name__ == "__main__":
    N = 384                 # non-multiple of the tile: exercises padded tail
    in_channels = 32
    hidden_channels = 64

    key = jax.random.PRNGKey(0)
    kz, kp = jax.random.split(key)
    z = jax.random.normal(kz, (N, in_channels), jnp.float32)
    w1, b1, w2, b2 = init_params(kp, in_channels, hidden_channels)

    out = degree_decoder(z, w1, b1, w2, b2)
    jax.block_until_ready(out)

    # Reference check against plain JAX.
    ref = (jnp.maximum(z @ w1 + b1, 0.0) @ w2 + b2).squeeze(-1)
    assert out.shape == (N,)
    assert jnp.allclose(out, ref, atol=1e-5, rtol=1e-5)

    print("KERNEL_OK")
</pallas_src>

<mosaic_0001>
module attributes {stable_mosaic.version = 11 : i64} {
  func.func @degree_decoder_kernel(%arg0: i32, %arg1: memref<256x32xf32, #tpu.memory_space<vmem>>, %arg2: memref<32x64xf32, #tpu.memory_space<vmem>>, %arg3: memref<1x64xf32, #tpu.memory_space<vmem>>, %arg4: memref<1x64xf32, #tpu.memory_space<vmem>>, %arg5: memref<1x1xf32, #tpu.memory_space<vmem>>, %arg6: memref<1x256xf32, #tpu.memory_space<vmem>>) attributes {dimension_semantics = [#tpu.dimension_semantics<parallel>], iteration_bounds = array<i64: 2>, scalar_prefetch = 0 : i64, scratch_operands = 0 : i64, tpu.core_type = #tpu.core_type<tc>, window_params = [{transform_indices = @transform_0, window_bounds = array<i64: 256, 32>}, {pipeline_mode = #tpu.pipeline_mode<synchronous>, transform_indices = @transform_1, window_bounds = array<i64: 32, 64>}, {pipeline_mode = #tpu.pipeline_mode<synchronous>, transform_indices = @transform_2, window_bounds = array<i64: 1, 64>}, {pipeline_mode = #tpu.pipeline_mode<synchronous>, transform_indices = @transform_3, window_bounds = array<i64: 1, 64>}, {pipeline_mode = #tpu.pipeline_mode<synchronous>, transform_indices = @transform_4, window_bounds = array<i64: 1, 1>}, {transform_indices = @transform_5, window_bounds = array<i64: 1, 256>}]} {
    %c0 = arith.constant 0 : index
    %c0_0 = arith.constant 0 : index
    %0 = vector.load %arg1[%c0, %c0_0] : memref<256x32xf32, #tpu.memory_space<vmem>>, vector<256x32xf32>
    %c0_1 = arith.constant 0 : index
    %c0_2 = arith.constant 0 : index
    %1 = vector.load %arg2[%c0_1, %c0_2] : memref<32x64xf32, #tpu.memory_space<vmem>>, vector<32x64xf32>
    %cst = arith.constant dense<0.000000e+00> : vector<256x64xf32>
    %2 = tpu.matmul %0, %1, %cst {dimension_numbers = #tpu.dot_dimension_numbers<[1], [0], [0], [1], [0, 0, 1, 1], [], []>} : vector<256x32xf32>, vector<32x64xf32>, vector<256x64xf32> -> vector<256x64xf32>
    %c0_3 = arith.constant 0 : index
    %c0_4 = arith.constant 0 : index
    %3 = vector.load %arg3[%c0_3, %c0_4] : memref<1x64xf32, #tpu.memory_space<vmem>>, vector<1x64xf32>
    %4 = vector.broadcast %3 : vector<1x64xf32> to vector<256x64xf32>
    %5 = arith.addf %2, %4 : vector<256x64xf32>
    %cst_5 = arith.constant 0.000000e+00 : f32
    %6 = vector.broadcast %cst_5 : f32 to vector<256x64xf32>
    %7 = arith.maximumf %5, %6 : vector<256x64xf32>
    %c0_6 = arith.constant 0 : index
    %c0_7 = arith.constant 0 : index
    %8 = vector.load %arg4[%c0_6, %c0_7] : memref<1x64xf32, #tpu.memory_space<vmem>>, vector<1x64xf32>
    %cst_8 = arith.constant dense<0.000000e+00> : vector<1x256xf32>
    %9 = tpu.matmul %8, %7, %cst_8 {dimension_numbers = #tpu.dot_dimension_numbers<[1], [1], [0], [0], [0, 0, 1, 0], [], []>} : vector<1x64xf32>, vector<256x64xf32>, vector<1x256xf32> -> vector<1x256xf32>
    %c0_9 = arith.constant 0 : index
    %c0_10 = arith.constant 0 : index
    %10 = vector.load %arg5[%c0_9, %c0_10] : memref<1x1xf32, #tpu.memory_space<vmem>>, vector<1x1xf32>
    %11 = vector.broadcast %10 : vector<1x1xf32> to vector<1x256xf32>
    %12 = arith.addf %9, %11 : vector<1x256xf32>
    %c0_11 = arith.constant 0 : index
    %c0_12 = arith.constant 0 : index
    %13 = vector.load %arg6[%c0_11, %c0_12] : memref<1x256xf32, #tpu.memory_space<vmem>>, vector<1x256xf32>
    tpu.vector_store %arg6[%c0_11, %c0_12], %12 {strides = array<i32>} : memref<1x256xf32, #tpu.memory_space<vmem>>, vector<1x256xf32>,
    return
  }
  func.func @transform_0(%arg0: i32) -> (i32, i32) {
    %c0_i32 = arith.constant 0 : i32
    %c0_i32_0 = arith.constant 0 : i32
    return %arg0, %c0_i32 : i32, i32
  }
  func.func @transform_1(%arg0: i32) -> (i32, i32) {
    %c0_i32 = arith.constant 0 : i32
    %c0_i32_0 = arith.constant 0 : i32
    %c0_i32_1 = arith.constant 0 : i32
    return %c0_i32, %c0_i32_0 : i32, i32
  }
  func.func @transform_2(%arg0: i32) -> (i32, i32) {
    %c0_i32 = arith.constant 0 : i32
    %c0_i32_0 = arith.constant 0 : i32
    %c0_i32_1 = arith.constant 0 : i32
    return %c0_i32, %c0_i32_0 : i32, i32
  }
  func.func @transform_3(%arg0: i32) -> (i32, i32) {
    %c0_i32 = arith.constant 0 : i32
    %c0_i32_0 = arith.constant 0 : i32
    %c0_i32_1 = arith.constant 0 : i32
    return %c0_i32, %c0_i32_0 : i32, i32
  }
  func.func @transform_4(%arg0: i32) -> (i32, i32) {
    %c0_i32 = arith.constant 0 : i32
    %c0_i32_0 = arith.constant 0 : i32
    %c0_i32_1 = arith.constant 0 : i32
    return %c0_i32, %c0_i32_0 : i32, i32
  }
  func.func @transform_5(%arg0: i32) -> (i32, i32) {
    %c0_i32 = arith.constant 0 : i32
    %c0_i32_0 = arith.constant 0 : i32
    return %c0_i32, %arg0 : i32, i32
  }
}

</mosaic_0001>

<llo_original>
// kernel: tpu_custom_call.1
$region0: #{tpu_custom_call.1}
  #allocation0 [shape = 'u32[]', space=smem, size = 0x4, offset = 0x4, fixed_abs, tag = 'smem constant byte address 0x4 - core index']
  #allocation1 [shape = 'u32[72,128]{1,0:T(1,128)}', space=vmem, size = 0x9000, scoped, tag = 'internal scratch']
  #allocation2 [shape = 'f32[1,1]{1,0:T(1,128)S(1)}', space=vmem, size = 0x200, scoped, tag = 'scoped memory for tpu_custom_call.1']
  %s0 = inlined_call_operand.vmem [shape: f32[512,32], index: 0, kind: input, shape index: {}]
  %s1 = inlined_call_operand.vmem [shape: f32[32,64], index: 1, kind: input, shape index: {}]
  %s2 = inlined_call_operand.vmem [shape: f32[1,64], index: 2, kind: input, shape index: {}]
  %s3 = inlined_call_operand.vmem [shape: f32[1,64], index: 3, kind: input, shape index: {}]
  %s4 = inlined_call_operand.<no memory space> [shape: f32[1,1], index: 4, kind: input, shape index: {}]
  %s5 = inlined_call_operand.hbm [shape: f32[1,512], index: 5, kind: output, shape index: {}]
  %s6 = sld [smem:[#allocation0]]
  $region53: #{tpu_custom_call.1} parent=0
    _
  %s8 = ssub.s32 1, %s6
  %s9 = scalar_select 0, %s8, %s6
  %v10 = vstv %s4
  %11 = vst [vmem:[#allocation2] sm:$0x1] %v10
  $region1: #{tpu_custom_call.1} parent=0
    #allocation3 [shape = 'u8[2048]{0}', space=vmem, size = 0x800, scoped, tag = 'output window, operand 0']
    #allocation4 [shape = 's32[2]{0}', space=sflag, size = 0x8, scoped, tag = 'scoped memory for tpu_custom_call.1']
    %12 = vsyncpa [#allocation4], 0
    %s13 = scalar_lea.sflag [#allocation4], 1
    %14 = vsyncpa %s13, 0
    loop: start=0, step=1, limit=4
    $region2: #{tpu_custom_call.1} parent=1 // loop_pre_header
      _
    $region3: #{tpu_custom_call.1} parent=1 // loop_header
      %s16 = sphi 0, %s20
      %p17 = scmp.ge.s32.totalorder %s16, 4
      %s26 = sphi 0, %s28
      %s29 = sphi 0, %s26
      %s30 = sphi 0, %s29
      %s46 = sphi 0, %s30
      %s50 = sphi 0, %s50
      %s52 = sphi 0, %s50
      %s53 = sphi 0, %s52
      %s67 = sphi 0, %s53
      %s71 = sphi 0, %s71
      %s73 = sphi 0, %s71
      %s74 = sphi 0, %s73
      %s88 = sphi 0, %s74
      %s92 = sphi 0, %s92
      %s94 = sphi 0, %s92
      %s95 = sphi 0, %s94
      %s109 = sphi 0, %s95
      %s113 = sphi 0, %s113
      %s115 = sphi 0, %s113
      %s116 = sphi 0, %s115
      %s130 = sphi 0, %s116
      %s136 = sphi 0, %s138
      %s139 = sphi 0, %s136
      %s140 = sphi 0, %s139
      %s156 = sphi 0, %s140
    $region4: #{tpu_custom_call.1} parent=1 // loop_header_branch
      %19 = sbr.rel (%p17) target = $region8
    $region5: #{tpu_custom_call.1} parent=1 // loop_body
      %s21 = ssub.s32 %s16, 1
      %s22 = ssub.s32 %s16, 2
      %s23 = sadd.s32 %s16, 1
      %s24 = ssub.s32 %s16, %s23
      %p25 = scmp.eq.s32.totalorder %s24, 0
      %s27 = sadd.s32 %s26, 1
      %s28 = scalar_select %p25, %s26, %s27
      %p31 = pneg %p25
      %p32 = scmp.eq.s32.totalorder %s16, 1
      %p33 = por %p31, %p32
      %p34 = scmp.ne.s32.totalorder %s26, %s29
      %p35 = scmp.eq.s32.totalorder %s16, 0
      %p36 = por %p34, %p35
      %p37 = scmp.ne.s32.totalorder %s26, %s29
      %p38 = scmp.eq.s32.totalorder %s21, 1
      %p39 = por %p37, %p38
      %p40 = scmp.ne.s32.totalorder %s29, %s30
      %p41 = scmp.eq.s32.totalorder %s21, 0
      %p42 = por %p40, %p41
      %p43 = scmp.ne.s32.totalorder %s29, %s30
      %p44 = scmp.eq.s32.totalorder %s22, 1
      %p45 = por %p43, %p44
      %p47 = scmp.ne.s32.totalorder %s30, %s46
      %p48 = scmp.eq.s32.totalorder %s22, 0
      %p49 = por %p47, %p48
      %s51 = sadd.s32 %s50, 1
      %p54 = scmp.eq.s32.totalorder %s16, 1
      %p55 = scmp.ne.s32.totalorder %s50, %s52
      %p56 = scmp.eq.s32.totalorder %s16, 0
      %p57 = por %p55, %p56
      %p58 = scmp.ne.s32.totalorder %s50, %s52
      %p59 = scmp.eq.s32.totalorder %s21, 1
      %p60 = por %p58, %p59
      %p61 = scmp.ne.s32.totalorder %s52, %s53
      %p62 = scmp.eq.s32.totalorder %s21, 0
      %p63 = por %p61, %p62
      %p64 = scmp.ne.s32.totalorder %s52, %s53
      %p65 = scmp.eq.s32.totalorder %s22, 1
      %p66 = por %p64, %p65
      %p68 = scmp.ne.s32.totalorder %s53, %s67
      %p69 = scmp.eq.s32.totalorder %s22, 0
      %p70 = por %p68, %p69
      %s72 = sadd.s32 %s71, 1
      %p75 = scmp.eq.s32.totalorder %s16, 1
      %p76 = scmp.ne.s32.totalorder %s71, %s73
      %p77 = scmp.eq.s32.totalorder %s16, 0
      %p78 = por %p76, %p77
      %p79 = scmp.ne.s32.totalorder %s71, %s73
      %p80 = scmp.eq.s32.totalorder %s21, 1
      %p81 = por %p79, %p80
      %p82 = scmp.ne.s32.totalorder %s73, %s74
      %p83 = scmp.eq.s32.totalorder %s21, 0
      %p84 = por %p82, %p83
      %p85 = scmp.ne.s32.totalorder %s73, %s74
      %p86 = scmp.eq.s32.totalorder %s22, 1
      %p87 = por %p85, %p86
      %p89 = scmp.ne.s32.totalorder %s74, %s88
      %p90 = scmp.eq.s32.totalorder %s22, 0
      %p91 = por %p89, %p90
      %s93 = sadd.s32 %s92, 1
      %p96 = scmp.eq.s32.totalorder %s16, 1
      %p97 = scmp.ne.s32.totalorder %s92, %s94
      %p98 = scmp.eq.s32.totalorder %s16, 0
      %p99 = por %p97, %p98
      %p100 = scmp.ne.s32.totalorder %s92, %s94
      %p101 = scmp.eq.s32.totalorder %s21, 1
      %p102 = por %p100, %p101
      %p103 = scmp.ne.s32.totalorder %s94, %s95
      %p104 = scmp.eq.s32.totalorder %s21, 0
      %p105 = por %p103, %p104
      %p106 = scmp.ne.s32.totalorder %s94, %s95
      %p107 = scmp.eq.s32.totalorder %s22, 1
      %p108 = por %p106, %p107
      %p110 = scmp.ne.s32.totalorder %s95, %s109
      %p111 = scmp.eq.s32.totalorder %s22, 0
      %p112 = por %p110, %p111
      %s114 = sadd.s32 %s113, 1
      %p117 = scmp.eq.s32.totalorder %s16, 1
      %p118 = scmp.ne.s32.totalorder %s113, %s115
      %p119 = scmp.eq.s32.totalorder %s16, 0
      %p120 = por %p118, %p119
      %p121 = scmp.ne.s32.totalorder %s113, %s115
      %p122 = scmp.eq.s32.totalorder %s21, 1
      %p123 = por %p121, %p122
      %p124 = scmp.ne.s32.totalorder %s115, %s116
      %p125 = scmp.eq.s32.totalorder %s21, 0
      %p126 = por %p124, %p125
      %p127 = scmp.ne.s32.totalorder %s115, %s116
      %p128 = scmp.eq.s32.totalorder %s22, 1
      %p129 = por %p127, %p128
      %p131 = scmp.ne.s32.totalorder %s116, %s130
      %p132 = scmp.eq.s32.totalorder %s22, 0
      %p133 = por %p131, %p132
      %s134 = ssub.s32 %s16, %s23
      %p135 = scmp.eq.s32.totalorder %s134, 0
      %s137 = sadd.s32 %s136, 1
      %s138 = scalar_select %p135, %s136, %s137
      %p141 = pneg %p135
      %p142 = scmp.eq.s32.totalorder %s16, 1
      %p143 = por %p141, %p142
      %p144 = scmp.ne.s32.totalorder %s136, %s139
      %p145 = scmp.eq.s32.totalorder %s16, 0
      %p146 = por %p144, %p145
      %p147 = scmp.ne.s32.totalorder %s136, %s139
      %p148 = scmp.eq.s32.totalorder %s21, 1
      %p149 = por %p147, %p148
      %p150 = scmp.ne.s32.totalorder %s139, %s140
      %p151 = scmp.eq.s32.totalorder %s21, 0
      %p152 = por %p150, %p151
      %p153 = scmp.ne.s32.totalorder %s139, %s140
      %p154 = scmp.eq.s32.totalorder %s22, 1
      %p155 = por %p153, %p154
      %p157 = scmp.ne.s32.totalorder %s140, %s156
      %p158 = scmp.eq.s32.totalorder %s22, 0
      %p159 = por %p157, %p158
      %p160 = scmp.le.s32.totalorder 1, %s16
      %p161 = scmp.lt.s32.totalorder %s16, 3
      %p162 = pnand %p160, %p161
      %p163 = pneg %p162
      // Predicated region
      $region9: #{tpu_custom_call.1} parent=5 // pred_check
        _
      $region10: #{tpu_custom_call.1} parent=5 // pred_check_branch
        %165 = sbr.rel (%p162) target = $region12
      $region11: #{tpu_custom_call.1} parent=5 // pred_region
        %s166 = ssub.s32 %s16, 1
        // Predicated region
        $region13: #{tpu_custom_call.1} parent=11 // pred_check
          %p167 = pneg %p63
        $region14: #{tpu_custom_call.1} parent=11 // pred_check_branch
          %169 = sbr.rel (%p167) target = $region16
        $region15: #{tpu_custom_call.1} parent=11 // pred_region
          _
        $region16: #{tpu_custom_call.1} parent=11 // pred_fallthru
          _
        // Predicated region
        $region17: #{tpu_custom_call.1} parent=11 // pred_check
          %p170 = pneg %p84
        $region18: #{tpu_custom_call.1} parent=11 // pred_check_branch
          %172 = sbr.rel (%p170) target = $region20
        $region19: #{tpu_custom_call.1} parent=11 // pred_region
          _
        $region20: #{tpu_custom_call.1} parent=11 // pred_fallthru
          _
        // Predicated region
        $region21: #{tpu_custom_call.1} parent=11 // pred_check
          %p173 = pneg %p105
        $region22: #{tpu_custom_call.1} parent=11 // pred_check_branch
          %175 = sbr.rel (%p173) target = $region24
        $region23: #{tpu_custom_call.1} parent=11 // pred_region
          _
        $region24: #{tpu_custom_call.1} parent=11 // pred_fallthru
          _
        // Predicated region
        $region25: #{tpu_custom_call.1} parent=11 // pred_check
          %p176 = pneg %p126
        $region26: #{tpu_custom_call.1} parent=11 // pred_check_branch
          %178 = sbr.rel (%p176) target = $region28
        $region27: #{tpu_custom_call.1} parent=11 // pred_region
          _
        $region28: #{tpu_custom_call.1} parent=11 // pred_fallthru
          _
      $region12: #{tpu_custom_call.1} parent=5 // pred_fallthru
        _
      %p179 = scmp.lt.s32.totalorder %s16, 2
      // Predicated region
      $region29: #{tpu_custom_call.1} parent=5 // pred_check
        %p180 = pneg %p179
      $region30: #{tpu_custom_call.1} parent=5 // pred_check_branch
        %182 = sbr.rel (%p180) target = $region32
      $region31: #{tpu_custom_call.1} parent=5 // pred_region
        // Predicated region
        $region33: #{tpu_custom_call.1} parent=31 // pred_check
          %p183 = pneg %p36
        $region34: #{tpu_custom_call.1} parent=31 // pred_check_branch
          %185 = sbr.rel (%p183) target = $region36
        $region35: #{tpu_custom_call.1} parent=31 // pred_region
          %s186 = smul.u32 32, %s16
          %p187 = scmp.lt.s32.totalorder %s186, 63
          %s188 = scalar_select %p187, %s186, 63
          %s189 = smul.addr %s188, 8
          %s190 = scalar_lea.vmem %s0, %s189
          %s191 = smul.u32 32, %s16
        $region36: #{tpu_custom_call.1} parent=31 // pred_fallthru
          _
      $region32: #{tpu_custom_call.1} parent=5 // pred_fallthru
        _
      %p192 = scmp.le.s32.totalorder 1, %s16
      %p193 = scmp.lt.s32.totalorder %s16, 3
      %p194 = pnand %p192, %p193
      %p195 = pneg %p194
      // Predicated region
      $region37: #{tpu_custom_call.1} parent=5 // pred_check
        _
      $region38: #{tpu_custom_call.1} parent=5 // pred_check_branch
        %197 = sbr.rel (%p194) target = $region40
      $region39: #{tpu_custom_call.1} parent=5 // pred_region
        %s198 = ssub.s32 %s16, 1
        %s199 = smul.u32 32, %s21
        %p200 = scmp.lt.s32.totalorder %s199, 63
        %s201 = scalar_select %p200, %s199, 63
        %s202 = smul.addr %s201, 8
        %s203 = scalar_lea.vmem %s0, %s202
        %p204 = pneg %p42
        %p205 = pneg %p39
        %p206 = pneg %p63
        %p207 = pneg %p60
        %p208 = pneg %p84
        %p209 = pneg %p81
        %p210 = pneg %p105
        %p211 = pneg %p102
        %p212 = pneg %p126
        %p213 = pneg %p123
        %p214 = pneg %p152
        %p215 = pneg %p149
        %s216 = sand.u32 %s139, 1
        %s217 = scalar_lea.sflag [#allocation4], %s216
        %s218 = sand.u32 %s139, 1
        %s219 = smul.addr %s218, 2
        %s220 = scalar_lea.vmem [#allocation3], %s219
        %s221 = smul.u32 32, %s21
        %p222 = scmp.lt.s32.totalorder %s221, 63
        %s223 = scalar_select %p222, %s221, 63
        %s224 = smul.addr %s223, 8
        %s225 = scalar_lea.vmem %s0, %s224
        %s226 = smul.u32 32, %s21
        %s227 = smul.u32 2, %s21
        %v228 = vld [vmem:[%s225] sm:$0xff]
        %v229 = vld [vmem:[%s225 + $0x8] sm:$0xff]
        %v230 = vld [vmem:[%s225 + $0x10] sm:$0xff]
        %v231 = vld [vmem:[%s225 + $0x18] sm:$0xff]
        %v232 = vld [vmem:[%s225 + $0x20] sm:$0xff]
        %v233 = vld [vmem:[%s225 + $0x28] sm:$0xff]
        %v234 = vld [vmem:[%s225 + $0x30] sm:$0xff]
        %v235 = vld [vmem:[%s225 + $0x38] sm:$0xff]
        %v236 = vld [vmem:[%s225 + $0x40] sm:$0xff]
        %v237 = vld [vmem:[%s225 + $0x48] sm:$0xff]
        %v238 = vld [vmem:[%s225 + $0x50] sm:$0xff]
        %v239 = vld [vmem:[%s225 + $0x58] sm:$0xff]
        %v240 = vld [vmem:[%s225 + $0x60] sm:$0xff]
        %v241 = vld [vmem:[%s225 + $0x68] sm:$0xff]
        %v242 = vld [vmem:[%s225 + $0x70] sm:$0xff]
        %v243 = vld [vmem:[%s225 + $0x78] sm:$0xff]
        %v244 = vld [vmem:[%s225 + $0x80] sm:$0xff]
        %v245 = vld [vmem:[%s225 + $0x88] sm:$0xff]
        %v246 = vld [vmem:[%s225 + $0x90] sm:$0xff]
        %v247 = vld [vmem:[%s225 + $0x98] sm:$0xff]
        %v248 = vld [vmem:[%s225 + $0xa0] sm:$0xff]
        %v249 = vld [vmem:[%s225 + $0xa8] sm:$0xff]
        %v250 = vld [vmem:[%s225 + $0xb0] sm:$0xff]
        %v251 = vld [vmem:[%s225 + $0xb8] sm:$0xff]
        %v252 = vld [vmem:[%s225 + $0xc0] sm:$0xff]
        %v253 = vld [vmem:[%s225 + $0xc8] sm:$0xff]
        %v254 = vld [vmem:[%s225 + $0xd0] sm:$0xff]
        %v255 = vld [vmem:[%s225 + $0xd8] sm:$0xff]
        %v256 = vld [vmem:[%s225 + $0xe0] sm:$0xff]
        %v257 = vld [vmem:[%s225 + $0xe8] sm:$0xff]
        %v258 = vld [vmem:[%s225 + $0xf0] sm:$0xff]
        %v259 = vld [vmem:[%s225 + $0xf8] sm:$0xff]
        %v260 = vld [vmem:[%s1] sm:$0xff]
        %v261 = vld [vmem:[%s1 + $0x8] sm:$0xff]
        %v262 = vld [vmem:[%s1 + $0x10] sm:$0xff]
        %v263 = vld [vmem:[%s1 + $0x18] sm:$0xff]
        %v264 = vld [vmem:[%s2] sm:$0x1]
        %v266 = vperm.slane %v264, 0
        %vm268 = vcmask 261120
        %v270 = vsel %vm268, %v228, 0
        %v273 = vsel %vm268, %v229, 0
        %v276 = vsel %vm268, %v230, 0
        %v279 = vsel %vm268, %v231, 0
        %v282 = vsel %vm268, %v232, 0
        %v285 = vsel %vm268, %v233, 0
        %v288 = vsel %vm268, %v234, 0
        %v291 = vsel %vm268, %v235, 0
        %v294 = vsel %vm268, %v236, 0
        %v297 = vsel %vm268, %v237, 0
        %v300 = vsel %vm268, %v238, 0
        %v303 = vsel %vm268, %v239, 0
        %v306 = vsel %vm268, %v240, 0
        %v309 = vsel %vm268, %v241, 0
        %v312 = vsel %vm268, %v242, 0
        %v315 = vsel %vm268, %v243, 0
        %v318 = vsel %vm268, %v244, 0
        %v321 = vsel %vm268, %v245, 0
        %v324 = vsel %vm268, %v246, 0
        %v327 = vsel %vm268, %v247, 0
        %v330 = vsel %vm268, %v248, 0
        %v333 = vsel %vm268, %v249, 0
        %v336 = vsel %vm268, %v250, 0
        %v339 = vsel %vm268, %v251, 0
        %v342 = vsel %vm268, %v252, 0
        %v345 = vsel %vm268, %v253, 0
        %v348 = vsel %vm268, %v254, 0
        %v351 = vsel %vm268, %v255, 0
        %v354 = vsel %vm268, %v256, 0
        %v357 = vsel %vm268, %v257, 0
        %v360 = vsel %vm268, %v258, 0
        %v363 = vsel %vm268, %v259, 0
        %365 = vmatpush.msra.mxu0 0.0
        %366 = vmatpush.msra.mxu0 0.0
        %367 = vmatpush.msra.mxu0 0.0
        %368 = vmatpush.msra.mxu0 0.0
        %369 = vmatpush.msra.mxu0 0.0
        %370 = vmatpush.msra.mxu0 0.0
        %371 = vmatpush.msra.mxu0 0.0
        %372 = vmatpush.msra.mxu0 0.0
        %373 = vmatpush.msra.mxu0 0.0
        %374 = vmatpush.msra.mxu0 0.0
        %375 = vmatpush.msra.mxu0 0.0
        %376 = vmatpush.msra.mxu0 0.0
        %377 = vmatpush.msra.mxu0 %v263
        %378 = vmatpush.msra.mxu0 %v262
        %379 = vmatpush.msra.mxu0 %v261
        %380 = vmatpush.msra.mxu0 %v260
        %381 = vmatmul.f32.gmra.mxu0 %v270
        %v382 = vpop.f32.mrf.mxu0
        %v383 = vadd.f32 %v266, %v382
        %384 = vmatmul.f32.gmra.mxu0 %v273
        %v385 = vpop.f32.mrf.mxu0
        %v386 = vadd.f32 %v266, %v385
        %387 = vmatmul.f32.gmra.mxu0 %v276
        %v388 = vpop.f32.mrf.mxu0
        %v389 = vadd.f32 %v266, %v388
        %390 = vmatmul.f32.gmra.mxu0 %v279
        %v391 = vpop.f32.mrf.mxu0
        %v392 = vadd.f32 %v266, %v391
        %393 = vmatmul.f32.gmra.mxu0 %v282
        %v394 = vpop.f32.mrf.mxu0
        %v395 = vadd.f32 %v266, %v394
        %396 = vmatmul.f32.gmra.mxu0 %v285
        %v397 = vpop.f32.mrf.mxu0
        %v398 = vadd.f32 %v266, %v397
        %399 = vmatmul.f32.gmra.mxu0 %v288
        %v400 = vpop.f32.mrf.mxu0
        %v401 = vadd.f32 %v266, %v400
        %402 = vmatmul.f32.gmra.mxu0 %v291
        %v403 = vpop.f32.mrf.mxu0
        %v404 = vadd.f32 %v266, %v403
        %405 = vmatmul.f32.gmra.mxu0 %v294
        %v406 = vpop.f32.mrf.mxu0
        %v407 = vadd.f32 %v266, %v406
        %408 = vmatmul.f32.gmra.mxu0 %v297
        %v409 = vpop.f32.mrf.mxu0
        %v410 = vadd.f32 %v266, %v409
        %411 = vmatmul.f32.gmra.mxu0 %v300
        %v412 = vpop.f32.mrf.mxu0
        %v413 = vadd.f32 %v266, %v412
        %414 = vmatmul.f32.gmra.mxu0 %v303
        %v415 = vpop.f32.mrf.mxu0
        %v416 = vadd.f32 %v266, %v415
        %417 = vmatmul.f32.gmra.mxu0 %v306
        %v418 = vpop.f32.mrf.mxu0
        %v419 = vadd.f32 %v266, %v418
        %420 = vmatmul.f32.gmra.mxu0 %v309
        %v421 = vpop.f32.mrf.mxu0
        %v422 = vadd.f32 %v266, %v421
        %423 = vmatmul.f32.gmra.mxu0 %v312
        %v424 = vpop.f32.mrf.mxu0
        %v425 = vadd.f32 %v266, %v424
        %426 = vmatmul.f32.gmra.mxu0 %v315
        %v427 = vpop.f32.mrf.mxu0
        %v428 = vadd.f32 %v266, %v427
        %429 = vmatmul.f32.gmra.mxu0 %v318
        %v430 = vpop.f32.mrf.mxu0
        %v431 = vadd.f32 %v266, %v430
        %432 = vmatmul.f32.gmra.mxu0 %v321
        %v433 = vpop.f32.mrf.mxu0
        %v434 = vadd.f32 %v266, %v433
        %435 = vmatmul.f32.gmra.mxu0 %v324
        %v436 = vpop.f32.mrf.mxu0
        %v437 = vadd.f32 %v266, %v436
        %438 = vmatmul.f32.gmra.mxu0 %v327
        %v439 = vpop.f32.mrf.mxu0
        %v440 = vadd.f32 %v266, %v439
        %441 = vmatmul.f32.gmra.mxu0 %v330
        %v442 = vpop.f32.mrf.mxu0
        %v443 = vadd.f32 %v266, %v442
        %444 = vmatmul.f32.gmra.mxu0 %v333
        %v445 = vpop.f32.mrf.mxu0
        %v446 = vadd.f32 %v266, %v445
        %447 = vmatmul.f32.gmra.mxu0 %v336
        %v448 = vpop.f32.mrf.mxu0
        %v449 = vadd.f32 %v266, %v448
        %450 = vmatmul.f32.gmra.mxu0 %v339
        %v451 = vpop.f32.mrf.mxu0
        %v452 = vadd.f32 %v266, %v451
        %453 = vmatmul.f32.gmra.mxu0 %v342
        %v454 = vpop.f32.mrf.mxu0
        %v455 = vadd.f32 %v266, %v454
        %456 = vmatmul.f32.gmra.mxu0 %v345
        %v457 = vpop.f32.mrf.mxu0
        %v458 = vadd.f32 %v266, %v457
        %459 = vmatmul.f32.gmra.mxu0 %v348
        %v460 = vpop.f32.mrf.mxu0
        %v461 = vadd.f32 %v266, %v460
        %462 = vmatmul.f32.gmra.mxu0 %v351
        %v463 = vpop.f32.mrf.mxu0
        %v464 = vadd.f32 %v266, %v463
        %465 = vmatmul.f32.gmra.mxu0 %v354
        %v466 = vpop.f32.mrf.mxu0
        %v467 = vadd.f32 %v266, %v466
        %468 = vmatmul.f32.gmra.mxu0 %v357
        %v469 = vpop.f32.mrf.mxu0
        %v470 = vadd.f32 %v266, %v469
        %471 = vmatmul.f32.gmra.mxu0 %v360
        %v472 = vpop.f32.mrf.mxu0
        %v473 = vadd.f32 %v266, %v472
        %474 = vmatmul.f32.gmra.mxu0 %v363
        %v475 = vpop.f32.mrf.mxu0
        %v476 = vadd.f32 %v266, %v475
        %477 = vdwg.mxu0
        %v478 = vmax.f32 %v383, 0.0
        %v479 = vmax.f32 %v386, 0.0
        %v480 = vmax.f32 %v389, 0.0
        %v481 = vmax.f32 %v392, 0.0
        %v482 = vmax.f32 %v395, 0.0
        %v483 = vmax.f32 %v398, 0.0
        %v484 = vmax.f32 %v401, 0.0
        %v485 = vmax.f32 %v404, 0.0
        %v486 = vmax.f32 %v407, 0.0
        %v487 = vmax.f32 %v410, 0.0
        %v488 = vmax.f32 %v413, 0.0
        %v489 = vmax.f32 %v416, 0.0
        %v490 = vmax.f32 %v419, 0.0
        %v491 = vmax.f32 %v422, 0.0
        %v492 = vmax.f32 %v425, 0.0
        %v493 = vmax.f32 %v428, 0.0
        %v494 = vmax.f32 %v431, 0.0
        %v495 = vmax.f32 %v434, 0.0
        %v496 = vmax.f32 %v437, 0.0
        %v497 = vmax.f32 %v440, 0.0
        %v498 = vmax.f32 %v443, 0.0
        %v499 = vmax.f32 %v446, 0.0
        %v500 = vmax.f32 %v449, 0.0
        %v501 = vmax.f32 %v452, 0.0
        %v502 = vmax.f32 %v455, 0.0
        %v503 = vmax.f32 %v458, 0.0
        %v504 = vmax.f32 %v461, 0.0
        %v505 = vmax.f32 %v464, 0.0
        %v506 = vmax.f32 %v467, 0.0
        %v507 = vmax.f32 %v470, 0.0
        %v508 = vmax.f32 %v473, 0.0
        %v509 = vmax.f32 %v476, 0.0
        %v510 = vld [vmem:[%s3] sm:$0x1]
        %v511 = vld [vmem:[#allocation2] sm:$0x1]
        %513 = vset.pattern.permute.xlu0 0
        %514 = vperm.xlu0 %513, %v511
        %v515 = vpop.permute.xlu0 %514
        %v517 = vperm.slane %v515, 0
        %vm518 = vcmask 523264
        %v520 = vsel %vm518, %v510, 0
        %v523 = vsel %vm518, %v478, 0
        %v526 = vsel %vm518, %v479, 0
        %v529 = vsel %vm518, %v480, 0
        %v532 = vsel %vm518, %v481, 0
        %v535 = vsel %vm518, %v482, 0
        %v538 = vsel %vm518, %v483, 0
        %v541 = vsel %vm518, %v484, 0
        %v544 = vsel %vm518, %v485, 0
        %v547 = vsel %vm518, %v486, 0
        %v550 = vsel %vm518, %v487, 0
        %v553 = vsel %vm518, %v488, 0
        %v556 = vsel %vm518, %v489, 0
        %v559 = vsel %vm518, %v490, 0
        %v562 = vsel %vm518, %v491, 0
        %v565 = vsel %vm518, %v492, 0
        %v568 = vsel %vm518, %v493, 0
        %v571 = vsel %vm518, %v494, 0
        %v574 = vsel %vm518, %v495, 0
        %v577 = vsel %vm518, %v496, 0
        %v580 = vsel %vm518, %v497, 0
        %v583 = vsel %vm518, %v498, 0
        %v586 = vsel %vm518, %v499, 0
        %v589 = vsel %vm518, %v500, 0
        %v592 = vsel %vm518, %v501, 0
        %v595 = vsel %vm518, %v502, 0
        %v598 = vsel %vm518, %v503, 0
        %v601 = vsel %vm518, %v504, 0
        %v604 = vsel %vm518, %v505, 0
        %v607 = vsel %vm518, %v506, 0
        %v610 = vsel %vm518, %v507, 0
        %v613 = vsel %vm518, %v508, 0
        %v616 = vsel %vm518, %v509, 0
        %618 = vmatpush.xpose.msra.mxu0 %v568
        %619 = vmatpush.xpose.msra.mxu0 %v565
        %620 = vmatpush.xpose.msra.mxu0 %v562
        %621 = vmatpush.xpose.msra.mxu0 %v559
        %622 = vmatpush.xpose.msra.mxu0 %v556
        %623 = vmatpush.xpose.msra.mxu0 %v553
        %624 = vmatpush.xpose.msra.mxu0 %v550
        %625 = vmatpush.xpose.msra.mxu0 %v547
        %626 = vmatpush.xpose.msra.mxu0 %v544
        %627 = vmatpush.xpose.msra.mxu0 %v541
        %628 = vmatpush.xpose.msra.mxu0 %v538
        %629 = vmatpush.xpose.msra.mxu0 %v535
        %630 = vmatpush.xpose.msra.mxu0 %v532
        %631 = vmatpush.xpose.msra.mxu0 %v529
        %632 = vmatpush.xpose.msra.mxu0 %v526
        %633 = vmatpush.xpose.msra.mxu0 %v523
        %634 = vmatmul.f32.gmra.mxu0 %v520
        %v635 = vpop.f32.mrf.mxu0
        %v636 = vadd.f32 %v517, %v635
        %637 = vdwg.mxu0
        %638 = vmatpush.xpose.msra.mxu0 %v616
        %639 = vmatpush.xpose.msra.mxu0 %v613
        %640 = vmatpush.xpose.msra.mxu0 %v610
        %641 = vmatpush.xpose.msra.mxu0 %v607
        %642 = vmatpush.xpose.msra.mxu0 %v604
        %643 = vmatpush.xpose.msra.mxu0 %v601
        %644 = vmatpush.xpose.msra.mxu0 %v598
        %645 = vmatpush.xpose.msra.mxu0 %v595
        %646 = vmatpush.xpose.msra.mxu0 %v592
        %647 = vmatpush.xpose.msra.mxu0 %v589
        %648 = vmatpush.xpose.msra.mxu0 %v586
        %649 = vmatpush.xpose.msra.mxu0 %v583
        %650 = vmatpush.xpose.msra.mxu0 %v580
        %651 = vmatpush.xpose.msra.mxu0 %v577
        %652 = vmatpush.xpose.msra.mxu0 %v574
        %653 = vmatpush.xpose.msra.mxu0 %v571
        %654 = vmatmul.f32.gmra.mxu0 %v520
        %v655 = vpop.f32.mrf.mxu0
        %v656 = vadd.f32 %v517, %v655
        %657 = vdwg.mxu0
        %v660 = vrot.slane %v656, 7
        %vm661 = vcmask 1040384
        %v662 = vsel %vm661, %v636, %v660
        %v664 = vlaneseq
        %vm665 = vcmp.ge.s32.totalorder %v664, 0
        %vm666 = vcmp.lt.s32.totalorder %v664, 256
        %vm667 = vmand %vm665, %vm666
        %668 = vst.msk [vmem:[%s220] sm:$0x3] %vm667, %v662
        %s669 = sand.u32 %s139, 1
        %s670 = scalar_lea.sflag [#allocation4], %s669
        %s671 = sand.u32 %s139, 1
        %s672 = smul.addr %s671, 2
        %s673 = scalar_lea.vmem [#allocation3], %s672
        // Predicated region
        $region41: #{tpu_custom_call.1} parent=39 // pred_check
          %p674 = pneg %p149
        $region42: #{tpu_custom_call.1} parent=39 // pred_check_branch
          %676 = sbr.rel (%p674) target = $region44
        $region43: #{tpu_custom_call.1} parent=39 // pred_region
          %s677 = smul.u32 2, %s21
          %679 = vsyncadd %s670, 0
          %s680 = scalar_lea.hbm %s5, %s677
          %s682 = sshll.u32 %s673, 4
          %s683 = int_to_ptr.vmem [resolvable:$true] %s682
          %s684 = sshll.u32 %s680, 4
          %s685 = int_to_ptr.hbm [resolvable:$true] %s684
          %687 = dma.vmem_to_hbm [thread:$0]  %s683, 32, %s685, %s670
        $region44: #{tpu_custom_call.1} parent=39 // pred_fallthru
          _
      $region40: #{tpu_custom_call.1} parent=5 // pred_fallthru
        _
      %p688 = scmp.le.s32.totalorder 2, %s16
      // Predicated region
      $region45: #{tpu_custom_call.1} parent=5 // pred_check
        %p689 = pneg %p688
      $region46: #{tpu_custom_call.1} parent=5 // pred_check_branch
        %691 = sbr.rel (%p689) target = $region48
      $region47: #{tpu_custom_call.1} parent=5 // pred_region
        %s692 = ssub.s32 %s16, 2
        // Predicated region
        $region49: #{tpu_custom_call.1} parent=47 // pred_check
          %p693 = pneg %p155
        $region50: #{tpu_custom_call.1} parent=47 // pred_check_branch
          %695 = sbr.rel (%p693) target = $region52
        $region51: #{tpu_custom_call.1} parent=47 // pred_region
          %s696 = sand.u32 %s140, 1
          %s697 = scalar_lea.sflag [#allocation4], %s696
          %s698 = sand.u32 %s140, 1
          %s699 = smul.addr %s698, 2
          %s700 = scalar_lea.vmem [#allocation3], %s699
          %702 = dma.done %s697, 32
        $region52: #{tpu_custom_call.1} parent=47 // pred_fallthru
          _
      $region48: #{tpu_custom_call.1} parent=5 // pred_fallthru
        _
    $region6: #{tpu_custom_call.1} parent=1 // loop_footer
      %s20 = sadd.s32 1, %s16
    $region7: #{tpu_custom_call.1} parent=1 // loop_footer_branch
      %15 = sbr.rel target = $region3
    $region8: #{tpu_custom_call.1} parent=1 // loop_exit
      _
    %703 = vsyncpa [#allocation4], 1
    %s704 = scalar_lea.sflag [#allocation4], 1
    %705 = vsyncpa %s704, 1

</llo_original>
